<compile_context>
chip_gen: v7x
topology: tpu7x:2x2x1
jax: 0.10.0
libtpu: 0.0.40
codegen_flags: <defaults>
</compile_context>

<pallas_src>
import jax
import jax.numpy as jnp
from jax.experimental import pallas as pl
from jax.experimental.pallas import tpu as pltpu

LANES = 128


def _round_up(x, m):
    return ((x + m - 1) // m) * m


def _tile_batch(b):
    """Pick (batch tile TB, padded batch Bp).

    Prefers large tiles (amortize per-grid-step overhead) and >=2 grid steps
    when the batch allows (v7x megacore sharding); pads only the remainder.
    """
    if b > 512:
        half = _round_up((b + 1) // 2, 8)
        tb = min(512, half)
        return tb, _round_up(b, tb)
    if b >= 16 and b % 16 == 0:
        return b // 2, b              # two grid steps, no padding
    bp = _round_up(b, 8)
    return bp, bp                     # single full-size block


# ----------------------------------------------------------------------------
# Pallas kernel: fusion_fc -> pooler -> classifier (one batch tile per step)
# ----------------------------------------------------------------------------
def fusion_head_kernel(tv_ref, iv_ref,
                       w1_ref, b1_ref,
                       w2_ref, b2_ref,
                       w3_ref, b3_ref,
                       out_ref):
    # fusion_fc: concat folded into a single K=Dt+Di bf16 matmul (f32 acc),
    # then f32 bias + ReLU.  Dropout(0.1) == identity in eval mode.
    fused = jnp.concatenate([tv_ref[...], iv_ref[...]], axis=1)     # (TB, Dt+Di)
    h = jnp.dot(fused, w1_ref[...],
                preferred_element_type=jnp.float32) + b1_ref[...]
    h = jnp.maximum(h, 0.0)
    # TODO(synk): training-mode Dropout(p=0.1) (random mask) not reproduced;
    # eval-mode identity semantics are used.

    # pooler: Linear(fusion_dim -> fusion_dim) + tanh (tanh/bias in f32).
    p = jnp.tanh(
        jnp.dot(h.astype(w2_ref.dtype), w2_ref[...],
                preferred_element_type=jnp.float32) + b2_ref[...])

    # classifier: Linear(fusion_dim -> num_labels), lane-padded to 128 so the
    # matmul and the store stay lane-dense; bf16 store halves the writeback.
    logits = (jnp.dot(p.astype(w3_ref.dtype), w3_ref[...],
                      preferred_element_type=jnp.float32) + b3_ref[...])
    out_ref[...] = logits.astype(out_ref.dtype)


def fusion_head(text_vec, image_vec, params):
    """text_vec (B, Dt) / image_vec (B, Di), both bfloat16.

    Returns float32 logits of shape (B, num_labels)."""
    B, Dt = text_vec.shape
    Di = image_vec.shape[1]
    K, F = params["w1"].shape
    assert K == Dt + Di
    n_out = params["w3p"].shape[1]           # lane-padded classifier width (128)
    n_labels = params["num_labels"]

    TB, Bp = _tile_batch(B)
    if Bp != B:
        # Pad only the batch remainder rows (tiny); weights are pre-padded.
        text_vec = jnp.pad(text_vec, ((0, Bp - B), (0, 0)))
        image_vec = jnp.pad(image_vec, ((0, Bp - B), (0, 0)))
    grid = (pl.cdiv(Bp, TB),)

    logits_padded = pl.pallas_call(
        fusion_head_kernel,
        out_shape=jax.ShapeDtypeStruct((Bp, n_out), jnp.bfloat16),
        grid=grid,
        in_specs=[
            pl.BlockSpec((TB, Dt), lambda i: (i, 0)),      # text CLS tile
            pl.BlockSpec((TB, Di), lambda i: (i, 0)),      # image CLS tile
            pl.BlockSpec((K, F), lambda i: (0, 0)),        # W1 fused (resident)
            pl.BlockSpec((1, F), lambda i: (0, 0)),        # b1
            pl.BlockSpec((F, F), lambda i: (0, 0)),        # W2 (resident)
            pl.BlockSpec((1, F), lambda i: (0, 0)),        # b2
            pl.BlockSpec((F, n_out), lambda i: (0, 0)),    # W3 lane-padded (resident)
            pl.BlockSpec((1, n_out), lambda i: (0, 0)),    # b3 lane-padded
        ],
        out_specs=pl.BlockSpec((TB, n_out), lambda i: (i, 0)),
        compiler_params=pltpu.CompilerParams(
            dimension_semantics=("parallel",)),   # v7x: batch sharded over 2 TCs
    )(text_vec, image_vec,
      params["w1"], params["b1"], params["w2"], params["b2"],
      params["w3p"], params["b3p"])

    return logits_padded[:B, :n_labels].astype(jnp.float32)


# ----------------------------------------------------------------------------
# Stand-in encoders (glue).  The real module uses pretrained DistilBERT/ViT;
# those have no self-contained Pallas equivalent here.  Both emit bf16 CLS
# vectors (the cast fuses into their last XLA op, so the kernel reads bf16).
# ----------------------------------------------------------------------------
# TODO(synk): pretrained DistilBERT / ViT transformer stacks are not
# reproduced; deterministic stand-ins emit the per-sample CLS vectors.
def text_encoder_stub(input_ids, attention_mask, tok_emb):
    # (B, L) -> gather embeddings (B, L, Dt); CLS = position 0 (like [:, 0, :]).
    hidden = jnp.take(tok_emb, input_ids, axis=0)
    del attention_mask  # stand-in encoder does not attend
    return hidden[:, 0, :].astype(jnp.bfloat16)


def image_encoder_stub(pixel_values, patch_w, patch_size):
    # pixel_values: NCHW (B, C, H, W)  ->  patches (B, P, C*ps*ps)
    B, C, H, W = pixel_values.shape
    ph, pw = H // patch_size, W // patch_size
    x = pixel_values.reshape(B, C, ph, patch_size, pw, patch_size)
    x = jnp.transpose(x, (0, 2, 4, 1, 3, 5))           # (B, ph, pw, C, ps, ps)
    patches = x.reshape(B, ph * pw, C * patch_size * patch_size)
    # ViT-style patch embedding + mean pool as the CLS stand-in.
    emb = jnp.einsum("bpk,kd->bpd", patches, patch_w)
    return emb.mean(axis=1).astype(jnp.bfloat16)


# ----------------------------------------------------------------------------
# Full forward (mirrors LightWeightMMTD.forward)
# ----------------------------------------------------------------------------
def lightweight_mmtd_forward(input_ids, attention_mask, pixel_values,
                             params, labels=None):
    text_vec = text_encoder_stub(input_ids, attention_mask, params["tok_emb"])
    image_vec = image_encoder_stub(pixel_values, params["patch_w"],
                                   params["patch_size"])
    logits = fusion_head(text_vec, image_vec, params)

    loss = None
    if labels is not None:
        # TODO(synk): CE loss could be fused into the kernel epilogue; kept in
        # JAX glue here (2-lane softmax, negligible cost).
        logp = jax.nn.log_softmax(logits, axis=-1)
        loss = -jnp.mean(jnp.take_along_axis(logp, labels[:, None], axis=1))
    return loss, logits


# ----------------------------------------------------------------------------
# Deterministic parameter init.  Head weights are stored ONCE as bf16, with
# W1 pre-concatenated (text/image halves) and W3/b3 pre-padded to 128 lanes,
# so nothing is cast or padded per forward call.
# ----------------------------------------------------------------------------
def make_params(key, vocab, text_dim, image_dim, fusion_dim, num_labels,
                patch_dim, patch_size):
    ks = jax.random.split(key, 8)
    s = 0.05
    n_out = _round_up(num_labels, LANES)
    w1t = jax.random.normal(ks[2], (text_dim, fusion_dim), jnp.float32) * s
    w1i = jax.random.normal(ks[3], (image_dim, fusion_dim), jnp.float32) * s
    w3 = jax.random.normal(ks[6], (fusion_dim, num_labels), jnp.float32) * s
    return {
        "tok_emb": jax.random.normal(ks[0], (vocab, text_dim), jnp.float32) * s,
        "patch_w": jax.random.normal(ks[1], (patch_dim, image_dim), jnp.float32) * s,
        "patch_size": patch_size,
        "num_labels": num_labels,
        # fusion_fc
        "w1": jnp.concatenate([w1t, w1i], axis=0).astype(jnp.bfloat16),
        "b1": (jax.random.normal(ks[4], (1, fusion_dim), jnp.float32) * s),
        # pooler
        "w2": (jax.random.normal(ks[5], (fusion_dim, fusion_dim),
                                 jnp.float32) * s).astype(jnp.bfloat16),
        "b2": jnp.zeros((1, fusion_dim), jnp.float32),
        # classifier (lane-padded to 128 output lanes)
        "w3p": jnp.zeros((fusion_dim, n_out), jnp.bfloat16).at[:, :num_labels]
                  .set(w3.astype(jnp.bfloat16)),
        "b3p": jnp.zeros((1, n_out), jnp.float32),
    }


if __name__ == "__main__":
    # Small shapes consistent with the forward (feature dims 128-aligned):
    B, L, VOCAB = 2, 8, 100            # text: (B, L) token ids
    C, H, W, PS = 3, 16, 16, 8         # image: NCHW, patch 8 -> 4 patches
    TEXT_DIM, IMAGE_DIM = 128, 128     # scaled-down hidden sizes (real: 768/768)
    FUSION_DIM, NUM_LABELS = 128, 2    # scaled-down fusion_dim (real: 384)

    key = jax.random.PRNGKey(0)
    k_in, k_par = jax.random.split(key)
    k1, k2, k3, k4 = jax.random.split(k_in, 4)

    input_ids = jax.random.randint(k1, (B, L), 0, VOCAB, dtype=jnp.int32)
    attention_mask = jnp.ones((B, L), dtype=jnp.int32)
    pixel_values = jax.random.normal(k2, (B, C, H, W), dtype=jnp.float32)
    labels = jax.random.randint(k3, (B,), 0, NUM_LABELS, dtype=jnp.int32)

    params = make_params(k_par, VOCAB, TEXT_DIM, IMAGE_DIM, FUSION_DIM,
                         NUM_LABELS, C * PS * PS, PS)

    loss, logits = lightweight_mmtd_forward(
        input_ids, attention_mask, pixel_values, params, labels=labels)
    logits = jax.block_until_ready(logits)
    loss = jax.block_until_ready(loss)

    # Pure-JAX reference for the fusion head (correctness guard).  It uses the
    # same bf16-quantized weights/activations upcast to f32; the kernel adds
    # bf16 intermediate/output rounding, so a loosened tolerance is used.
    tv = text_encoder_stub(input_ids, attention_mask, params["tok_emb"])
    iv = image_encoder_stub(pixel_values, params["patch_w"], PS)
    fused = jnp.concatenate([tv, iv], axis=1).astype(jnp.float32)
    w1f = params["w1"].astype(jnp.float32)
    w2f = params["w2"].astype(jnp.float32)
    w3f = params["w3p"].astype(jnp.float32)[:, :NUM_LABELS]
    b3f = params["b3p"][:, :NUM_LABELS]
    h_ref = jnp.maximum(fused @ w1f + params["b1"], 0.0)
    p_ref = jnp.tanh(h_ref @ w2f + params["b2"])
    logits_ref = p_ref @ w3f + b3f

    assert logits.shape == (B, NUM_LABELS)
    assert jnp.allclose(logits, logits_ref, atol=2e-2, rtol=2e-2), (
        logits, logits_ref)
    assert jnp.isfinite(loss)

    print("KERNEL_OK")
</pallas_src>

<mosaic_0001>
module attributes {stable_mosaic.version = 11 : i64} {
  func.func @fusion_head_kernel(%arg0: i32, %arg1: memref<8x128xbf16, #tpu.memory_space<vmem>>, %arg2: memref<8x128xbf16, #tpu.memory_space<vmem>>, %arg3: memref<256x128xbf16, #tpu.memory_space<vmem>>, %arg4: memref<1x128xf32, #tpu.memory_space<vmem>>, %arg5: memref<128x128xbf16, #tpu.memory_space<vmem>>, %arg6: memref<1x128xf32, #tpu.memory_space<vmem>>, %arg7: memref<128x128xbf16, #tpu.memory_space<vmem>>, %arg8: memref<1x128xf32, #tpu.memory_space<vmem>>, %arg9: memref<8x128xbf16, #tpu.memory_space<vmem>>) attributes {dimension_semantics = [#tpu.dimension_semantics<parallel>], iteration_bounds = array<i64: 1>, scalar_prefetch = 0 : i64, scratch_operands = 0 : i64, tpu.core_type = #tpu.core_type<tc>, window_params = [{transform_indices = @transform_0, window_bounds = array<i64: 8, 128>}, {transform_indices = @transform_1, window_bounds = array<i64: 8, 128>}, {pipeline_mode = #tpu.pipeline_mode<synchronous>, transform_indices = @transform_2, window_bounds = array<i64: 256, 128>}, {pipeline_mode = #tpu.pipeline_mode<synchronous>, transform_indices = @transform_3, window_bounds = array<i64: 1, 128>}, {pipeline_mode = #tpu.pipeline_mode<synchronous>, transform_indices = @transform_4, window_bounds = array<i64: 128, 128>}, {pipeline_mode = #tpu.pipeline_mode<synchronous>, transform_indices = @transform_5, window_bounds = array<i64: 1, 128>}, {pipeline_mode = #tpu.pipeline_mode<synchronous>, transform_indices = @transform_6, window_bounds = array<i64: 128, 128>}, {pipeline_mode = #tpu.pipeline_mode<synchronous>, transform_indices = @transform_7, window_bounds = array<i64: 1, 128>}, {transform_indices = @transform_8, window_bounds = array<i64: 8, 128>}]} {
    %c0 = arith.constant 0 : index
    %c0_0 = arith.constant 0 : index
    %0 = vector.load %arg1[%c0, %c0_0] : memref<8x128xbf16, #tpu.memory_space<vmem>>, vector<8x128xbf16>
    %c0_1 = arith.constant 0 : index
    %c0_2 = arith.constant 0 : index
    %1 = vector.load %arg2[%c0_1, %c0_2] : memref<8x128xbf16, #tpu.memory_space<vmem>>, vector<8x128xbf16>
    %2 = tpu.concatenate %0, %1 in 1 : vector<8x128xbf16>, vector<8x128xbf16> -> vector<8x256xbf16>
    %c0_3 = arith.constant 0 : index
    %c0_4 = arith.constant 0 : index
    %3 = vector.load %arg3[%c0_3, %c0_4] : memref<256x128xbf16, #tpu.memory_space<vmem>>, vector<256x128xbf16>
    %cst = arith.constant dense<0.000000e+00> : vector<8x128xf32>
    %4 = tpu.matmul %2, %3, %cst {dimension_numbers = #tpu.dot_dimension_numbers<[1], [0], [0], [1], [0, 0, 1, 1], [], []>} : vector<8x256xbf16>, vector<256x128xbf16>, vector<8x128xf32> -> vector<8x128xf32>
    %c0_5 = arith.constant 0 : index
    %c0_6 = arith.constant 0 : index
    %5 = vector.load %arg4[%c0_5, %c0_6] : memref<1x128xf32, #tpu.memory_space<vmem>>, vector<1x128xf32>
    %6 = vector.broadcast %5 : vector<1x128xf32> to vector<8x128xf32>
    %7 = arith.addf %4, %6 : vector<8x128xf32>
    %cst_7 = arith.constant 0.000000e+00 : f32
    %8 = vector.broadcast %cst_7 : f32 to vector<8x128xf32>
    %9 = arith.maximumf %7, %8 : vector<8x128xf32>
    %10 = arith.truncf %9 : vector<8x128xf32> to vector<8x128xbf16>
    %c0_8 = arith.constant 0 : index
    %c0_9 = arith.constant 0 : index
    %11 = vector.load %arg5[%c0_8, %c0_9] : memref<128x128xbf16, #tpu.memory_space<vmem>>, vector<128x128xbf16>
    %cst_10 = arith.constant dense<0.000000e+00> : vector<8x128xf32>
    %12 = tpu.matmul %10, %11, %cst_10 {dimension_numbers = #tpu.dot_dimension_numbers<[1], [0], [0], [1], [0, 0, 1, 1], [], []>} : vector<8x128xbf16>, vector<128x128xbf16>, vector<8x128xf32> -> vector<8x128xf32>
    %c0_11 = arith.constant 0 : index
    %c0_12 = arith.constant 0 : index
    %13 = vector.load %arg6[%c0_11, %c0_12] : memref<1x128xf32, #tpu.memory_space<vmem>>, vector<1x128xf32>
    %14 = vector.broadcast %13 : vector<1x128xf32> to vector<8x128xf32>
    %15 = arith.addf %12, %14 : vector<8x128xf32>
    %16 = math.tanh %15 : vector<8x128xf32>
    %17 = arith.truncf %16 : vector<8x128xf32> to vector<8x128xbf16>
    %c0_13 = arith.constant 0 : index
    %c0_14 = arith.constant 0 : index
    %18 = vector.load %arg7[%c0_13, %c0_14] : memref<128x128xbf16, #tpu.memory_space<vmem>>, vector<128x128xbf16>
    %cst_15 = arith.constant dense<0.000000e+00> : vector<8x128xf32>
    %19 = tpu.matmul %17, %18, %cst_15 {dimension_numbers = #tpu.dot_dimension_numbers<[1], [0], [0], [1], [0, 0, 1, 1], [], []>} : vector<8x128xbf16>, vector<128x128xbf16>, vector<8x128xf32> -> vector<8x128xf32>
    %c0_16 = arith.constant 0 : index
    %c0_17 = arith.constant 0 : index
    %20 = vector.load %arg8[%c0_16, %c0_17] : memref<1x128xf32, #tpu.memory_space<vmem>>, vector<1x128xf32>
    %21 = vector.broadcast %20 : vector<1x128xf32> to vector<8x128xf32>
    %22 = arith.addf %19, %21 : vector<8x128xf32>
    %23 = arith.truncf %22 : vector<8x128xf32> to vector<8x128xbf16>
    %c0_18 = arith.constant 0 : index
    %c0_19 = arith.constant 0 : index
    %24 = vector.load %arg9[%c0_18, %c0_19] : memref<8x128xbf16, #tpu.memory_space<vmem>>, vector<8x128xbf16>
    tpu.vector_store %arg9[%c0_18, %c0_19], %23 {strides = array<i32>} : memref<8x128xbf16, #tpu.memory_space<vmem>>, vector<8x128xbf16>,
    return
  }
  func.func @transform_0(%arg0: i32) -> (i32, i32) {
    %c0_i32 = arith.constant 0 : i32
    %c0_i32_0 = arith.constant 0 : i32
    return %arg0, %c0_i32 : i32, i32
  }
  func.func @transform_1(%arg0: i32) -> (i32, i32) {
    %c0_i32 = arith.constant 0 : i32
    %c0_i32_0 = arith.constant 0 : i32
    return %arg0, %c0_i32 : i32, i32
  }
  func.func @transform_2(%arg0: i32) -> (i32, i32) {
    %c0_i32 = arith.constant 0 : i32
    %c0_i32_0 = arith.constant 0 : i32
    %c0_i32_1 = arith.constant 0 : i32
    return %c0_i32, %c0_i32_0 : i32, i32
  }
  func.func @transform_3(%arg0: i32) -> (i32, i32) {
    %c0_i32 = arith.constant 0 : i32
    %c0_i32_0 = arith.constant 0 : i32
    %c0_i32_1 = arith.constant 0 : i32
    return %c0_i32, %c0_i32_0 : i32, i32
  }
  func.func @transform_4(%arg0: i32) -> (i32, i32) {
    %c0_i32 = arith.constant 0 : i32
    %c0_i32_0 = arith.constant 0 : i32
    %c0_i32_1 = arith.constant 0 : i32
    return %c0_i32, %c0_i32_0 : i32, i32
  }
  func.func @transform_5(%arg0: i32) -> (i32, i32) {
    %c0_i32 = arith.constant 0 : i32
    %c0_i32_0 = arith.constant 0 : i32
    %c0_i32_1 = arith.constant 0 : i32
    return %c0_i32, %c0_i32_0 : i32, i32
  }
  func.func @transform_6(%arg0: i32) -> (i32, i32) {
    %c0_i32 = arith.constant 0 : i32
    %c0_i32_0 = arith.constant 0 : i32
    %c0_i32_1 = arith.constant 0 : i32
    return %c0_i32, %c0_i32_0 : i32, i32
  }
  func.func @transform_7(%arg0: i32) -> (i32, i32) {
    %c0_i32 = arith.constant 0 : i32
    %c0_i32_0 = arith.constant 0 : i32
    %c0_i32_1 = arith.constant 0 : i32
    return %c0_i32, %c0_i32_0 : i32, i32
  }
  func.func @transform_8(%arg0: i32) -> (i32, i32) {
    %c0_i32 = arith.constant 0 : i32
    %c0_i32_0 = arith.constant 0 : i32
    return %arg0, %c0_i32 : i32, i32
  }
}

</mosaic_0001>

<llo_original>
// kernel: tpu_custom_call.1
$region0: #{tpu_custom_call.1}
  #allocation0 [shape = 'u32[]', space=smem, size = 0x4, offset = 0x4, fixed_abs, tag = 'smem constant byte address 0x4 - core index']
  #allocation1 [shape = 'u32[144,128]{1,0:T(1,128)}', space=vmem, size = 0x12000, scoped, tag = 'internal scratch']
  %s0 = inlined_call_operand.hbm [shape: bf16[8,128], index: 0, kind: input, shape index: {}]
  %s1 = inlined_call_operand.hbm [shape: bf16[8,128], index: 1, kind: input, shape index: {}]
  %s2 = inlined_call_operand.hbm [shape: bf16[256,128], index: 2, kind: input, shape index: {}]
  %s3 = inlined_call_operand.vmem [shape: f32[1,128], index: 3, kind: input, shape index: {}]
  %s4 = inlined_call_operand.hbm [shape: bf16[128,128], index: 4, kind: input, shape index: {}]
  %s5 = inlined_call_operand.vmem [shape: f32[1,128], index: 5, kind: input, shape index: {}]
  %s6 = inlined_call_operand.hbm [shape: bf16[128,128], index: 6, kind: input, shape index: {}]
  %s7 = inlined_call_operand.vmem [shape: f32[1,128], index: 7, kind: input, shape index: {}]
  %s8 = inlined_call_operand.hbm [shape: bf16[8,128], index: 8, kind: output, shape index: {}]
  %s9 = sld [smem:[#allocation0]]
  $region62: #{tpu_custom_call.1} parent=0
    _
  %s11 = ssub.s32 1, %s9
  %s12 = scalar_select 0, %s11, %s9
  $region1: #{tpu_custom_call.1} parent=0
    #allocation2 [shape = 'u8[2048]{0}', space=vmem, size = 0x800, scoped, tag = 'input window, operand 0, single buffered']
    #allocation3 [shape = 's32[1]{0}', space=sflag, size = 0x4, scoped, tag = 'scoped memory for tpu_custom_call.1']
    #allocation4 [shape = 's32[1]{0}', space=sflag, size = 0x4, scoped, tag = 'scoped memory for tpu_custom_call.1']
    #allocation5 [shape = 'u8[2048]{0}', space=vmem, size = 0x800, scoped, tag = 'input window, operand 1, single buffered']
    #allocation6 [shape = 's32[1]{0}', space=sflag, size = 0x4, scoped, tag = 'scoped memory for tpu_custom_call.1']
    #allocation7 [shape = 'u8[65536]{0}', space=vmem, size = 0x10000, scoped, tag = 'input window, operand 2, single buffered']
    #allocation8 [shape = 'u8[32768]{0}', space=vmem, size = 0x8000, scoped, tag = 'input window, operand 4, single buffered']
    #allocation9 [shape = 's32[1]{0}', space=sflag, size = 0x4, scoped, tag = 'scoped memory for tpu_custom_call.1']
    #allocation10 [shape = 'u8[32768]{0}', space=vmem, size = 0x8000, scoped, tag = 'input window, operand 6, single buffered']
    #allocation11 [shape = 'u8[2048]{0}', space=vmem, size = 0x800, scoped, tag = 'output window, operand 0, single buffered']
    %13 = vsyncpa [#allocation3], 0
    %14 = vsyncpa [#allocation6], 0
    %15 = vsyncpa [#allocation9], 0
    %16 = vsyncpa [#allocation4], 0
    // Predicated region
    $region2: #{tpu_custom_call.1} parent=1 // pred_check
      _
    $region3: #{tpu_custom_call.1} parent=1 // pred_check_branch
      %18 = sbr.rel (0) target = $region5
    $region4: #{tpu_custom_call.1} parent=1 // pred_region
      %s20 = ssub.s32 64, 64
      %21 = vsyncadd [#allocation3], %s20
      %s23 = sshll.u32 [#allocation2], 4
      %s24 = int_to_ptr.vmem [resolvable:$true] %s23
      %26 = dma.hbm_to_vmem [thread:$0]  %s0, 64, %s24, [#allocation3]
    $region5: #{tpu_custom_call.1} parent=1 // pred_fallthru
      _
    // Predicated region
    $region6: #{tpu_custom_call.1} parent=1 // pred_check
      _
    $region7: #{tpu_custom_call.1} parent=1 // pred_check_branch
      %28 = sbr.rel (0) target = $region9
    $region8: #{tpu_custom_call.1} parent=1 // pred_region
      %s30 = ssub.s32 64, 64
      %31 = vsyncadd [#allocation6], %s30
      %s33 = sshll.u32 [#allocation5], 4
      %s34 = int_to_ptr.vmem [resolvable:$true] %s33
      %36 = dma.hbm_to_vmem [thread:$0]  %s1, 64, %s34, [#allocation6]
    $region9: #{tpu_custom_call.1} parent=1 // pred_fallthru
      _
    // Predicated region
    $region10: #{tpu_custom_call.1} parent=1 // pred_check
      _
    $region11: #{tpu_custom_call.1} parent=1 // pred_check_branch
      %38 = sbr.rel (0) target = $region13
    $region12: #{tpu_custom_call.1} parent=1 // pred_region
      %s40 = ssub.s32 2048, 2048
      %41 = vsyncadd [#allocation6], %s40
      %s42 = sshll.u32 [#allocation7], 4
      %s43 = int_to_ptr.vmem [resolvable:$true] %s42
      %48 = dma.hbm_to_vmem [thread:$0]  %s2, 2048, %s43, [#allocation6], 64, 64, 4
    $region13: #{tpu_custom_call.1} parent=1 // pred_fallthru
      _
    // Predicated region
    $region14: #{tpu_custom_call.1} parent=1 // pred_check
      _
    $region15: #{tpu_custom_call.1} parent=1 // pred_check_branch
      %50 = sbr.rel (0) target = $region17
    $region16: #{tpu_custom_call.1} parent=1 // pred_region
      _
    $region17: #{tpu_custom_call.1} parent=1 // pred_fallthru
      _
    // Predicated region
    $region18: #{tpu_custom_call.1} parent=1 // pred_check
      _
    $region19: #{tpu_custom_call.1} parent=1 // pred_check_branch
      %52 = sbr.rel (0) target = $region21
    $region20: #{tpu_custom_call.1} parent=1 // pred_region
      %s54 = ssub.s32 1024, 1024
      %55 = vsyncadd [#allocation9], %s54
      %s56 = sshll.u32 [#allocation8], 4
      %s57 = int_to_ptr.vmem [resolvable:$true] %s56
      %62 = dma.hbm_to_vmem [thread:$0]  %s4, 1024, %s57, [#allocation9], 64, 64, 4
    $region21: #{tpu_custom_call.1} parent=1 // pred_fallthru
      _
    // Predicated region
    $region22: #{tpu_custom_call.1} parent=1 // pred_check
      _
    $region23: #{tpu_custom_call.1} parent=1 // pred_check_branch
      %64 = sbr.rel (0) target = $region25
    $region24: #{tpu_custom_call.1} parent=1 // pred_region
      _
    $region25: #{tpu_custom_call.1} parent=1 // pred_fallthru
      _
    // Predicated region
    $region26: #{tpu_custom_call.1} parent=1 // pred_check
      _
    $region27: #{tpu_custom_call.1} parent=1 // pred_check_branch
      %66 = sbr.rel (0) target = $region29
    $region28: #{tpu_custom_call.1} parent=1 // pred_region
      %s68 = ssub.s32 1024, 1024
      %69 = vsyncadd [#allocation9], %s68
      %s70 = sshll.u32 [#allocation10], 4
      %s71 = int_to_ptr.vmem [resolvable:$true] %s70
      %76 = dma.hbm_to_vmem [thread:$0]  %s6, 1024, %s71, [#allocation9], 64, 64, 4
    $region29: #{tpu_custom_call.1} parent=1 // pred_fallthru
      _
    // Predicated region
    $region30: #{tpu_custom_call.1} parent=1 // pred_check
      _
    $region31: #{tpu_custom_call.1} parent=1 // pred_check_branch
      %78 = sbr.rel (0) target = $region33
    $region32: #{tpu_custom_call.1} parent=1 // pred_region
      _
    $region33: #{tpu_custom_call.1} parent=1 // pred_fallthru
      _
    // Predicated region
    $region34: #{tpu_custom_call.1} parent=1 // pred_check
      _
    $region35: #{tpu_custom_call.1} parent=1 // pred_check_branch
      %80 = sbr.rel (0) target = $region37
    $region36: #{tpu_custom_call.1} parent=1 // pred_region
      %81 = dma.done [#allocation3], 64
    $region37: #{tpu_custom_call.1} parent=1 // pred_fallthru
      _
    // Predicated region
    $region38: #{tpu_custom_call.1} parent=1 // pred_check
      _
    $region39: #{tpu_custom_call.1} parent=1 // pred_check_branch
      %83 = sbr.rel (0) target = $region41
    $region40: #{tpu_custom_call.1} parent=1 // pred_region
      %84 = dma.done [#allocation6], 64
    $region41: #{tpu_custom_call.1} parent=1 // pred_fallthru
      _
    // Predicated region
    $region42: #{tpu_custom_call.1} parent=1 // pred_check
      _
    $region43: #{tpu_custom_call.1} parent=1 // pred_check_branch
      %86 = sbr.rel (0) target = $region45
    $region44: #{tpu_custom_call.1} parent=1 // pred_region
      %87 = dma.done [#allocation6], 2048
    $region45: #{tpu_custom_call.1} parent=1 // pred_fallthru
      _
    // Predicated region
    $region46: #{tpu_custom_call.1} parent=1 // pred_check
      _
    $region47: #{tpu_custom_call.1} parent=1 // pred_check_branch
      %89 = sbr.rel (0) target = $region49
    $region48: #{tpu_custom_call.1} parent=1 // pred_region
      %90 = dma.done [#allocation9], 1024
    $region49: #{tpu_custom_call.1} parent=1 // pred_fallthru
      _
    // Predicated region
    $region50: #{tpu_custom_call.1} parent=1 // pred_check
      _
    $region51: #{tpu_custom_call.1} parent=1 // pred_check_branch
      %92 = sbr.rel (0) target = $region53
    $region52: #{tpu_custom_call.1} parent=1 // pred_region
      %93 = dma.done [#allocation9], 1024
    $region53: #{tpu_custom_call.1} parent=1 // pred_fallthru
      _
    %v95 = vld [vmem:[#allocation2] sm:$0xf]
    %v96 = vld [vmem:[#allocation5] sm:$0xf]
    %v97 = vld [vmem:[#allocation7] sm:$0xf]
    %v98 = vld [vmem:[#allocation7 + $0x4] sm:$0xf]
    %v99 = vld [vmem:[#allocation7 + $0x8] sm:$0xf]
    %v100 = vld [vmem:[#allocation7 + $0xc] sm:$0xf]
    %v101 = vld [vmem:[#allocation7 + $0x10] sm:$0xf]
    %v102 = vld [vmem:[#allocation7 + $0x14] sm:$0xf]
    %v103 = vld [vmem:[#allocation7 + $0x18] sm:$0xf]
    %v104 = vld [vmem:[#allocation7 + $0x1c] sm:$0xf]
    %v105 = vld [vmem:[#allocation7 + $0x20] sm:$0xf]
    %v106 = vld [vmem:[#allocation7 + $0x24] sm:$0xf]
    %v107 = vld [vmem:[#allocation7 + $0x28] sm:$0xf]
    %v108 = vld [vmem:[#allocation7 + $0x2c] sm:$0xf]
    %v109 = vld [vmem:[#allocation7 + $0x30] sm:$0xf]
    %v110 = vld [vmem:[#allocation7 + $0x34] sm:$0xf]
    %v111 = vld [vmem:[#allocation7 + $0x38] sm:$0xf]
    %v112 = vld [vmem:[#allocation7 + $0x3c] sm:$0xf]
    %v113 = vld [vmem:[#allocation7 + $0x40] sm:$0xf]
    %v114 = vld [vmem:[#allocation7 + $0x44] sm:$0xf]
    %v115 = vld [vmem:[#allocation7 + $0x48] sm:$0xf]
    %v116 = vld [vmem:[#allocation7 + $0x4c] sm:$0xf]
    %v117 = vld [vmem:[#allocation7 + $0x50] sm:$0xf]
    %v118 = vld [vmem:[#allocation7 + $0x54] sm:$0xf]
    %v119 = vld [vmem:[#allocation7 + $0x58] sm:$0xf]
    %v120 = vld [vmem:[#allocation7 + $0x5c] sm:$0xf]
    %v121 = vld [vmem:[#allocation7 + $0x60] sm:$0xf]
    %v122 = vld [vmem:[#allocation7 + $0x64] sm:$0xf]
    %v123 = vld [vmem:[#allocation7 + $0x68] sm:$0xf]
    %v124 = vld [vmem:[#allocation7 + $0x6c] sm:$0xf]
    %v125 = vld [vmem:[#allocation7 + $0x70] sm:$0xf]
    %v126 = vld [vmem:[#allocation7 + $0x74] sm:$0xf]
    %v127 = vld [vmem:[#allocation7 + $0x78] sm:$0xf]
    %v128 = vld [vmem:[#allocation7 + $0x7c] sm:$0xf]
    %v129 = vld [vmem:[%s3] sm:$0x1]
    %v131 = vlaneseq
    %v132 = vshrl.u32 %v131, 7
    %v133 = vsub.s32 0, %v132
    %v134 = vrot.slane %v129, %v133
    %v168 = vunpack.c.l.b16 %v97
    %v169 = vunpack.c.l.b16 %v98
    %v170 = vunpack.c.l.b16 %v99
    %v171 = vunpack.c.l.b16 %v100
    %v172 = vunpack.c.l.b16 %v101
    %v173 = vunpack.c.l.b16 %v102
    %v174 = vunpack.c.l.b16 %v103
    %v175 = vunpack.c.l.b16 %v104
    %v176 = vunpack.c.l.b16 %v105
    %v177 = vunpack.c.l.b16 %v106
    %v178 = vunpack.c.l.b16 %v107
    %v179 = vunpack.c.l.b16 %v108
    %v180 = vunpack.c.l.b16 %v109
    %v181 = vunpack.c.l.b16 %v110
    %v182 = vunpack.c.l.b16 %v111
    %v183 = vunpack.c.l.b16 %v112
    %v184 = vunpack.c.l.b16 %v113
    %v185 = vunpack.c.l.b16 %v114
    %v186 = vunpack.c.l.b16 %v115
    %v187 = vunpack.c.l.b16 %v116
    %v188 = vunpack.c.l.b16 %v117
    %v189 = vunpack.c.l.b16 %v118
    %v190 = vunpack.c.l.b16 %v119
    %v191 = vunpack.c.l.b16 %v120
    %v192 = vunpack.c.l.b16 %v121
    %v193 = vunpack.c.l.b16 %v122
    %v194 = vunpack.c.l.b16 %v123
    %v195 = vunpack.c.l.b16 %v124
    %v196 = vunpack.c.l.b16 %v125
    %v197 = vunpack.c.l.b16 %v126
    %v198 = vunpack.c.l.b16 %v127
    %v199 = vunpack.c.l.b16 %v128
    %v200 = vpack.c.b16 %v169, %v168
    %v201 = vpack.c.b16 %v171, %v170
    %v202 = vpack.c.b16 %v173, %v172
    %v203 = vpack.c.b16 %v175, %v174
    %v204 = vpack.c.b16 %v177, %v176
    %v205 = vpack.c.b16 %v179, %v178
    %v206 = vpack.c.b16 %v181, %v180
    %v207 = vpack.c.b16 %v183, %v182
    %v208 = vpack.c.b16 %v185, %v184
    %v209 = vpack.c.b16 %v187, %v186
    %v210 = vpack.c.b16 %v189, %v188
    %v211 = vpack.c.b16 %v191, %v190
    %v212 = vpack.c.b16 %v193, %v192
    %v213 = vpack.c.b16 %v195, %v194
    %v214 = vpack.c.b16 %v197, %v196
    %v215 = vpack.c.b16 %v199, %v198
    %232 = vmatprep.subr.bf16.mxu0 0
    %233 = vmatpush1.bf16.msra.mxu0 %v200
    %234 = vmatprep.subr.bf16.mxu0 0
    %235 = vmatpush1.bf16.msra.mxu0 %v201
    %236 = vmatprep.subr.bf16.mxu0 0
    %237 = vmatpush1.bf16.msra.mxu0 %v202
    %238 = vmatprep.subr.bf16.mxu0 0
    %239 = vmatpush1.bf16.msra.mxu0 %v203
    %240 = vmatprep.subr.bf16.mxu0 0
    %241 = vmatpush1.bf16.msra.mxu0 %v204
    %242 = vmatprep.subr.bf16.mxu0 0
    %243 = vmatpush1.bf16.msra.mxu0 %v205
    %244 = vmatprep.subr.bf16.mxu0 0
    %245 = vmatpush1.bf16.msra.mxu0 %v206
    %246 = vmatprep.subr.bf16.mxu0 0
    %247 = vmatpush1.bf16.msra.mxu0 %v207
    %248 = vmatprep.subr.bf16.mxu0 0
    %249 = vmatpush1.bf16.msra.mxu0 %v208
    %250 = vmatprep.subr.bf16.mxu0 0
    %251 = vmatpush1.bf16.msra.mxu0 %v209
    %252 = vmatprep.subr.bf16.mxu0 0
    %253 = vmatpush1.bf16.msra.mxu0 %v210
    %254 = vmatprep.subr.bf16.mxu0 0
    %255 = vmatpush1.bf16.msra.mxu0 %v211
    %256 = vmatprep.subr.bf16.mxu0 0
    %257 = vmatpush1.bf16.msra.mxu0 %v212
    %258 = vmatprep.subr.bf16.mxu0 0
    %259 = vmatpush1.bf16.msra.mxu0 %v213
    %260 = vmatprep.subr.bf16.mxu0 0
    %261 = vmatpush1.bf16.msra.mxu0 %v214
    %262 = vmatprep.subr.bf16.mxu0 0
    %263 = vmatpush1.bf16.msra.mxu0 %v215
    %264 = vmatprep.mubr.bf16.mxu0 %v96
    %265 = vmatmul.mubr.bf16.gmra.mrb[0].mxu0 %v95
    %v266 = vpop.f32.mrb[0].mxu0
    %v267 = vadd.f32 %v134, %v266
    %v268 = vpop.f32.mrb[0].mxu0
    %v269 = vpop.f32.mrb[0].mxu0
    %v270 = vpop.f32.mrb[0].mxu0
    %271 = vdwg.mxu0
    %v272 = vmax.f32 %v267, 0.0
    %v273 = vpack.c.bf16 %v272, %v272
    %v274 = vld [vmem:[#allocation8] sm:$0xf]
    %v275 = vld [vmem:[#allocation8 + $0x4] sm:$0xf]
    %v276 = vld [vmem:[#allocation8 + $0x8] sm:$0xf]
    %v277 = vld [vmem:[#allocation8 + $0xc] sm:$0xf]
    %v278 = vld [vmem:[#allocation8 + $0x10] sm:$0xf]
    %v279 = vld [vmem:[#allocation8 + $0x14] sm:$0xf]
    %v280 = vld [vmem:[#allocation8 + $0x18] sm:$0xf]
    %v281 = vld [vmem:[#allocation8 + $0x1c] sm:$0xf]
    %v282 = vld [vmem:[#allocation8 + $0x20] sm:$0xf]
    %v283 = vld [vmem:[#allocation8 + $0x24] sm:$0xf]
    %v284 = vld [vmem:[#allocation8 + $0x28] sm:$0xf]
    %v285 = vld [vmem:[#allocation8 + $0x2c] sm:$0xf]
    %v286 = vld [vmem:[#allocation8 + $0x30] sm:$0xf]
    %v287 = vld [vmem:[#allocation8 + $0x34] sm:$0xf]
    %v288 = vld [vmem:[#allocation8 + $0x38] sm:$0xf]
    %v289 = vld [vmem:[#allocation8 + $0x3c] sm:$0xf]
    %v290 = vld [vmem:[%s5] sm:$0x1]
    %v292 = vlaneseq
    %v293 = vshrl.u32 %v292, 7
    %v294 = vsub.s32 0, %v293
    %v295 = vrot.slane %v290, %v294
    %v313 = vunpack.c.l.b16 %v274
    %v314 = vunpack.c.l.b16 %v275
    %v315 = vunpack.c.l.b16 %v276
    %v316 = vunpack.c.l.b16 %v277
    %v317 = vunpack.c.l.b16 %v278
    %v318 = vunpack.c.l.b16 %v279
    %v319 = vunpack.c.l.b16 %v280
    %v320 = vunpack.c.l.b16 %v281
    %v321 = vunpack.c.l.b16 %v282
    %v322 = vunpack.c.l.b16 %v283
    %v323 = vunpack.c.l.b16 %v284
    %v324 = vunpack.c.l.b16 %v285
    %v325 = vunpack.c.l.b16 %v286
    %v326 = vunpack.c.l.b16 %v287
    %v327 = vunpack.c.l.b16 %v288
    %v328 = vunpack.c.l.b16 %v289
    %v329 = vpack.c.b16 %v314, %v313
    %v330 = vpack.c.b16 %v316, %v315
    %v331 = vpack.c.b16 %v318, %v317
    %v332 = vpack.c.b16 %v320, %v319
    %v333 = vpack.c.b16 %v322, %v321
    %v334 = vpack.c.b16 %v324, %v323
    %v335 = vpack.c.b16 %v326, %v325
    %v336 = vpack.c.b16 %v328, %v327
    %345 = vmatprep.subr.bf16.mxu0 0
    %346 = vmatpush1.bf16.msra.mxu0 %v329
    %347 = vmatprep.subr.bf16.mxu0 0
    %348 = vmatpush1.bf16.msra.mxu0 %v330
    %349 = vmatprep.subr.bf16.mxu0 0
    %350 = vmatpush1.bf16.msra.mxu0 %v331
    %351 = vmatprep.subr.bf16.mxu0 0
    %352 = vmatpush1.bf16.msra.mxu0 %v332
    %353 = vmatprep.subr.bf16.mxu0 0
    %354 = vmatpush1.bf16.msra.mxu0 %v333
    %355 = vmatprep.subr.bf16.mxu0 0
    %356 = vmatpush1.bf16.msra.mxu0 %v334
    %357 = vmatprep.subr.bf16.mxu0 0
    %358 = vmatpush1.bf16.msra.mxu0 %v335
    %359 = vmatprep.subr.bf16.mxu0 0
    %360 = vmatpush1.bf16.msra.mxu0 %v336
    %361 = vmatprep.subr.bf16.mxu0 0
    %362 = vmatpush1.bf16.msra.mxu0 0
    %363 = vmatprep.subr.bf16.mxu0 0
    %364 = vmatpush1.bf16.msra.mxu0 0
    %365 = vmatprep.subr.bf16.mxu0 0
    %366 = vmatpush1.bf16.msra.mxu0 0
    %367 = vmatprep.subr.bf16.mxu0 0
    %368 = vmatpush1.bf16.msra.mxu0 0
    %369 = vmatprep.subr.bf16.mxu0 0
    %370 = vmatpush1.bf16.msra.mxu0 0
    %371 = vmatprep.subr.bf16.mxu0 0
    %372 = vmatpush1.bf16.msra.mxu0 0
    %373 = vmatprep.subr.bf16.mxu0 0
    %374 = vmatpush1.bf16.msra.mxu0 0
    %375 = vmatprep.subr.bf16.mxu0 0
    %376 = vmatpush1.bf16.msra.mxu0 0
    %377 = vmatprep.mubr.bf16.mxu0 0
    %378 = vmatmul.mubr.bf16.gmra.mrb[0].mxu0 %v273
    %v379 = vpop.f32.mrb[0].mxu0
    %v380 = vadd.f32 %v295, %v379
    %v381 = vpop.f32.mrb[0].mxu0
    %v382 = vpop.f32.mrb[0].mxu0
    %v383 = vpop.f32.mrb[0].mxu0
    %384 = vdwg.mxu0
    %v385 = vtanh.pop %v380
    %v386 = vpack.c.bf16 %v385, %v385
    %v387 = vld [vmem:[#allocation10] sm:$0xf]
    %v388 = vld [vmem:[#allocation10 + $0x4] sm:$0xf]
    %v389 = vld [vmem:[#allocation10 + $0x8] sm:$0xf]
    %v390 = vld [vmem:[#allocation10 + $0xc] sm:$0xf]
    %v391 = vld [vmem:[#allocation10 + $0x10] sm:$0xf]
    %v392 = vld [vmem:[#allocation10 + $0x14] sm:$0xf]
    %v393 = vld [vmem:[#allocation10 + $0x18] sm:$0xf]
    %v394 = vld [vmem:[#allocation10 + $0x1c] sm:$0xf]
    %v395 = vld [vmem:[#allocation10 + $0x20] sm:$0xf]
    %v396 = vld [vmem:[#allocation10 + $0x24] sm:$0xf]
    %v397 = vld [vmem:[#allocation10 + $0x28] sm:$0xf]
    %v398 = vld [vmem:[#allocation10 + $0x2c] sm:$0xf]
    %v399 = vld [vmem:[#allocation10 + $0x30] sm:$0xf]
    %v400 = vld [vmem:[#allocation10 + $0x34] sm:$0xf]
    %v401 = vld [vmem:[#allocation10 + $0x38] sm:$0xf]
    %v402 = vld [vmem:[#allocation10 + $0x3c] sm:$0xf]
    %v403 = vld [vmem:[%s7] sm:$0x1]
    %v405 = vlaneseq
    %v406 = vshrl.u32 %v405, 7
    %v407 = vsub.s32 0, %v406
    %v408 = vrot.slane %v403, %v407
    %v426 = vunpack.c.l.b16 %v387
    %v427 = vunpack.c.l.b16 %v388
    %v428 = vunpack.c.l.b16 %v389
    %v429 = vunpack.c.l.b16 %v390
    %v430 = vunpack.c.l.b16 %v391
    %v431 = vunpack.c.l.b16 %v392
    %v432 = vunpack.c.l.b16 %v393
    %v433 = vunpack.c.l.b16 %v394
    %v434 = vunpack.c.l.b16 %v395
    %v435 = vunpack.c.l.b16 %v396
    %v436 = vunpack.c.l.b16 %v397
    %v437 = vunpack.c.l.b16 %v398
    %v438 = vunpack.c.l.b16 %v399
    %v439 = vunpack.c.l.b16 %v400
    %v440 = vunpack.c.l.b16 %v401
    %v441 = vunpack.c.l.b16 %v402
    %v442 = vpack.c.b16 %v427, %v426
    %v443 = vpack.c.b16 %v429, %v428
    %v444 = vpack.c.b16 %v431, %v430
    %v445 = vpack.c.b16 %v433, %v432
    %v446 = vpack.c.b16 %v435, %v434
    %v447 = vpack.c.b16 %v437, %v436
    %v448 = vpack.c.b16 %v439, %v438
    %v449 = vpack.c.b16 %v441, %v440
    %458 = vmatprep.subr.bf16.mxu0 0
    %459 = vmatpush1.bf16.msra.mxu0 %v442
    %460 = vmatprep.subr.bf16.mxu0 0
    %461 = vmatpush1.bf16.msra.mxu0 %v443
    %462 = vmatprep.subr.bf16.mxu0 0
    %463 = vmatpush1.bf16.msra.mxu0 %v444
    %464 = vmatprep.subr.bf16.mxu0 0
    %465 = vmatpush1.bf16.msra.mxu0 %v445
    %466 = vmatprep.subr.bf16.mxu0 0
    %467 = vmatpush1.bf16.msra.mxu0 %v446
    %468 = vmatprep.subr.bf16.mxu0 0
    %469 = vmatpush1.bf16.msra.mxu0 %v447
    %470 = vmatprep.subr.bf16.mxu0 0
    %471 = vmatpush1.bf16.msra.mxu0 %v448
    %472 = vmatprep.subr.bf16.mxu0 0
    %473 = vmatpush1.bf16.msra.mxu0 %v449
    %474 = vmatprep.subr.bf16.mxu0 0
    %475 = vmatpush1.bf16.msra.mxu0 0
    %476 = vmatprep.subr.bf16.mxu0 0
    %477 = vmatpush1.bf16.msra.mxu0 0
    %478 = vmatprep.subr.bf16.mxu0 0
    %479 = vmatpush1.bf16.msra.mxu0 0
    %480 = vmatprep.subr.bf16.mxu0 0
    %481 = vmatpush1.bf16.msra.mxu0 0
    %482 = vmatprep.subr.bf16.mxu0 0
    %483 = vmatpush1.bf16.msra.mxu0 0
    %484 = vmatprep.subr.bf16.mxu0 0
    %485 = vmatpush1.bf16.msra.mxu0 0
    %486 = vmatprep.subr.bf16.mxu0 0
    %487 = vmatpush1.bf16.msra.mxu0 0
    %488 = vmatprep.subr.bf16.mxu0 0
    %489 = vmatpush1.bf16.msra.mxu0 0
    %490 = vmatprep.mubr.bf16.mxu0 0
    %491 = vmatmul.mubr.bf16.gmra.mrb[0].mxu0 %v386
    %v492 = vpop.f32.mrb[0].mxu0
    %v493 = vadd.f32 %v408, %v492
    %v494 = vpop.f32.mrb[0].mxu0
    %v495 = vpop.f32.mrb[0].mxu0
    %v496 = vpop.f32.mrb[0].mxu0
    %497 = vdwg.mxu0
    %v498 = vpack.c.bf16 %v493, %v493
    %499 = vst [vmem:[#allocation11] sm:$0xf] %v498
    // Predicated region
    $region54: #{tpu_custom_call.1} parent=1 // pred_check
      _
    $region55: #{tpu_custom_call.1} parent=1 // pred_check_branch
      %501 = sbr.rel (0) target = $region57
    $region56: #{tpu_custom_call.1} parent=1 // pred_region
      %s503 = ssub.s32 64, 64
      %504 = vsyncadd [#allocation4], %s503
      %s506 = sshll.u32 [#allocation11], 4
      %s507 = int_to_ptr.vmem [resolvable:$true] %s506
      %509 = dma.vmem_to_hbm [thread:$0]  %s507, 64, %s8, [#allocation4]
    $region57: #{tpu_custom_call.1} parent=1 // pred_fallthru
      _
    // Predicated region
    $region58: #{tpu_custom_call.1} parent=1 // pred_check
      _
    $region59: #{tpu_custom_call.1} parent=1 // pred_check_branch
      %511 = sbr.rel (0) target = $region61
    $region60: #{tpu_custom_call.1} parent=1 // pred_region
      %512 = dma.done [#allocation4], 64
    $region61: #{tpu_custom_call.1} parent=1 // pred_fallthru
      _
    %513 = vsyncpa [#allocation3], 1
    %514 = vsyncpa [#allocation6], 1
    %515 = vsyncpa [#allocation9], 1
    %516 = vsyncpa [#allocation4], 1

</llo_original>
